<compile_context>
chip_gen: v7x
topology: tpu7x:2x2x1
jax: 0.10.0
libtpu: 0.0.40
codegen_flags: <defaults>
</compile_context>

<pallas_src>
import jax
import jax.numpy as jnp
from jax import lax
from jax.experimental import pallas as pl
from jax.experimental.pallas import tpu as pltpu


def _encoder_embedding_kernel(ids_ref, tab_ref, out_ref):
    """ids_ref: (TR, n_hot) int32 — already-offset multi-hot indices per row.
    tab_ref: (Vw, Dw) combined (block-diagonal-widened) embedding table.
    out_ref: (TR, Dw) float32 — lane-dense output block.
    """
    ids = ids_ref[...]                                    # (TR, n_hot) int32
    tr, n_hot = ids.shape
    v_wide = tab_ref.shape[0]

    # Multi-hot in (rows, vocab) orientation: ids as columns vs lane iota.
    iota = lax.broadcasted_iota(jnp.int32, (tr, v_wide), 1)
    hot = iota == ids[:, 0:1]
    for c in range(1, n_hot):                             # static unroll (n_hot small)
        hot = hot | (iota == ids[:, c:c + 1])
    hot = hot.astype(tab_ref.dtype)

    out_ref[...] = jnp.dot(
        hot, tab_ref[...], preferred_element_type=jnp.float32
    ).astype(out_ref.dtype)


def _pick_row_tile(n_rows, k, v_wide):
    """Largest tile dividing n_rows whose (tile, k*V) f32 one-hot stays small."""
    budget = 4 << 20  # ~4 MiB for the one-hot block; well under default scoped VMEM
    for t in (1024, 512, 256, 128, 64, 32, 16, 8):
        if n_rows % t == 0 and t * v_wide * 4 <= budget:
            return t
    return n_rows


def encoder_embedding(content_id, part_id, pos_table, content_table, part_table,
                      matmul_dtype=jnp.float32):
    """content_id, part_id: int (B, S). Returns float32 (B, S, D)."""
    B, S = content_id.shape
    S_tab, D = pos_table.shape
    assert S_tab == S, "seq_len of inputs must match position table"
    Vc = content_table.shape[0]
    Vp = part_table.shape[0]
    V = Vc + Vp + S
    N = B * S

    # Lane-pack factor: pack k consecutive tokens per output row so the stored
    # block's last dim is a multiple of 128 (lane-dense stores).
    if D < 128 and 128 % D == 0 and N % (128 // D) == 0:
        k = 128 // D
    else:
        k = 1
    n_rows = N // k

    # ---- host-side (wrapper) layout plumbing -------------------------------
    # Combined table: [content | part | position] rows, then block-diag widen.
    combined = jnp.concatenate(
        [content_table, part_table, pos_table], axis=0).astype(matmul_dtype)   # (V, D)
    tab_wide = jnp.kron(jnp.eye(k, dtype=matmul_dtype), combined)              # (kV, kD)

    # Per-token multi-hot indices into the combined vocab (3 per token),
    # then shift each packed sub-token j by j*V into its diagonal block.
    cid = content_id.reshape(N).astype(jnp.int32)
    pid = part_id.reshape(N).astype(jnp.int32) + Vc
    sid = jnp.tile(jnp.arange(S, dtype=jnp.int32), B) + (Vc + Vp)
    ids3 = jnp.stack([cid, pid, sid], axis=1)                                  # (N, 3)
    ids3 = ids3.reshape(n_rows, k, 3) + (
        jnp.arange(k, dtype=jnp.int32) * V)[None, :, None]
    ids_packed = ids3.reshape(n_rows, 3 * k)                                   # (rows, 3k)

    # ---- pallas call --------------------------------------------------------
    tr = _pick_row_tile(n_rows, k, k * V)
    grid = (n_rows // tr,)

    out_packed = pl.pallas_call(
        _encoder_embedding_kernel,
        out_shape=jax.ShapeDtypeStruct((n_rows, k * D), jnp.float32),
        grid=grid,
        in_specs=[
            pl.BlockSpec((tr, 3 * k), lambda i: (i, 0)),        # packed ids
            pl.BlockSpec((k * V, k * D), lambda i: (0, 0)),     # table: VMEM-resident
        ],
        out_specs=pl.BlockSpec((tr, k * D), lambda i: (i, 0)),  # lane-dense block
        compiler_params=pltpu.CompilerParams(
            dimension_semantics=("parallel",)),
    )(ids_packed, tab_wide)

    # (rows, k*D) is the row-major flat layout of (N, D): free reshape.
    return out_packed.reshape(B, S, D)


def _reference(content_id, part_id, pos_table, content_table, part_table):
    S = pos_table.shape[0]
    pos = pos_table[jnp.arange(S)][None]                 # (1, S, D)
    content = content_table[content_id]                  # (B, S, D)
    part = part_table[part_id]                           # (B, S, D)
    return pos + content + part


if __name__ == "__main__":
    # Small, forward-consistent shapes.
    n_content, n_part, n_dims, seq_len, batch = 64, 8, 32, 8, 2

    key = jax.random.PRNGKey(0)
    k_pos, k_ctab, k_ptab, k_cid, k_pid = jax.random.split(key, 5)

    # nn.Embedding default init: N(0, 1).
    pos_table = jax.random.normal(k_pos, (seq_len, n_dims), dtype=jnp.float32)
    content_table = jax.random.normal(k_ctab, (n_content, n_dims), dtype=jnp.float32)
    part_table = jax.random.normal(k_ptab, (n_part, n_dims), dtype=jnp.float32)

    content_id = jax.random.randint(k_cid, (batch, seq_len), 0, n_content, dtype=jnp.int32)
    part_id = jax.random.randint(k_pid, (batch, seq_len), 0, n_part, dtype=jnp.int32)

    out = encoder_embedding(content_id, part_id, pos_table, content_table, part_table)
    out = jax.block_until_ready(out)

    ref = _reference(content_id, part_id, pos_table, content_table, part_table)
    assert out.shape == (batch, seq_len, n_dims)
    assert jnp.allclose(out, ref, atol=1e-5, rtol=1e-5), "mismatch vs reference"

    print("KERNEL_OK")
</pallas_src>

<mosaic_0001>
module attributes {stable_mosaic.version = 11 : i64} {
  func.func @_encoder_embedding_kernel(%arg0: i32, %arg1: memref<4x12xi32, #tpu.memory_space<vmem>>, %arg2: memref<320x128xf32, #tpu.memory_space<vmem>>, %arg3: memref<4x128xf32, #tpu.memory_space<vmem>>) attributes {dimension_semantics = [#tpu.dimension_semantics<parallel>], iteration_bounds = array<i64: 1>, scalar_prefetch = 0 : i64, scratch_operands = 0 : i64, tpu.core_type = #tpu.core_type<tc>, window_params = [{transform_indices = @transform_0, window_bounds = array<i64: 4, 12>}, {pipeline_mode = #tpu.pipeline_mode<synchronous>, transform_indices = @transform_1, window_bounds = array<i64: 320, 128>}, {transform_indices = @transform_2, window_bounds = array<i64: 4, 128>}]} {
    %c0 = arith.constant 0 : index
    %c0_0 = arith.constant 0 : index
    %0 = vector.load %arg1[%c0, %c0_0] : memref<4x12xi32, #tpu.memory_space<vmem>>, vector<4x12xi32>
    %1 = tpu.iota {dimensions = array<i32: 1>} : vector<4x320xi32>
    %2 = vector.extract_strided_slice %0 {offsets = [0, 0], sizes = [4, 1], strides = [1, 1]} : vector<4x12xi32> to vector<4x1xi32>
    %3 = vector.broadcast %2 : vector<4x1xi32> to vector<4x320xi32>
    %4 = arith.cmpi eq, %1, %3 : vector<4x320xi32>
    %5 = vector.extract_strided_slice %0 {offsets = [0, 1], sizes = [4, 1], strides = [1, 1]} : vector<4x12xi32> to vector<4x1xi32>
    %6 = vector.broadcast %5 : vector<4x1xi32> to vector<4x320xi32>
    %7 = arith.cmpi eq, %1, %6 : vector<4x320xi32>
    %8 = arith.ori %4, %7 : vector<4x320xi1>
    %9 = vector.extract_strided_slice %0 {offsets = [0, 2], sizes = [4, 1], strides = [1, 1]} : vector<4x12xi32> to vector<4x1xi32>
    %10 = vector.broadcast %9 : vector<4x1xi32> to vector<4x320xi32>
    %11 = arith.cmpi eq, %1, %10 : vector<4x320xi32>
    %12 = arith.ori %8, %11 : vector<4x320xi1>
    %13 = vector.extract_strided_slice %0 {offsets = [0, 3], sizes = [4, 1], strides = [1, 1]} : vector<4x12xi32> to vector<4x1xi32>
    %14 = vector.broadcast %13 : vector<4x1xi32> to vector<4x320xi32>
    %15 = arith.cmpi eq, %1, %14 : vector<4x320xi32>
    %16 = arith.ori %12, %15 : vector<4x320xi1>
    %17 = vector.extract_strided_slice %0 {offsets = [0, 4], sizes = [4, 1], strides = [1, 1]} : vector<4x12xi32> to vector<4x1xi32>
    %18 = vector.broadcast %17 : vector<4x1xi32> to vector<4x320xi32>
    %19 = arith.cmpi eq, %1, %18 : vector<4x320xi32>
    %20 = arith.ori %16, %19 : vector<4x320xi1>
    %21 = vector.extract_strided_slice %0 {offsets = [0, 5], sizes = [4, 1], strides = [1, 1]} : vector<4x12xi32> to vector<4x1xi32>
    %22 = vector.broadcast %21 : vector<4x1xi32> to vector<4x320xi32>
    %23 = arith.cmpi eq, %1, %22 : vector<4x320xi32>
    %24 = arith.ori %20, %23 : vector<4x320xi1>
    %25 = vector.extract_strided_slice %0 {offsets = [0, 6], sizes = [4, 1], strides = [1, 1]} : vector<4x12xi32> to vector<4x1xi32>
    %26 = vector.broadcast %25 : vector<4x1xi32> to vector<4x320xi32>
    %27 = arith.cmpi eq, %1, %26 : vector<4x320xi32>
    %28 = arith.ori %24, %27 : vector<4x320xi1>
    %29 = vector.extract_strided_slice %0 {offsets = [0, 7], sizes = [4, 1], strides = [1, 1]} : vector<4x12xi32> to vector<4x1xi32>
    %30 = vector.broadcast %29 : vector<4x1xi32> to vector<4x320xi32>
    %31 = arith.cmpi eq, %1, %30 : vector<4x320xi32>
    %32 = arith.ori %28, %31 : vector<4x320xi1>
    %33 = vector.extract_strided_slice %0 {offsets = [0, 8], sizes = [4, 1], strides = [1, 1]} : vector<4x12xi32> to vector<4x1xi32>
    %34 = vector.broadcast %33 : vector<4x1xi32> to vector<4x320xi32>
    %35 = arith.cmpi eq, %1, %34 : vector<4x320xi32>
    %36 = arith.ori %32, %35 : vector<4x320xi1>
    %37 = vector.extract_strided_slice %0 {offsets = [0, 9], sizes = [4, 1], strides = [1, 1]} : vector<4x12xi32> to vector<4x1xi32>
    %38 = vector.broadcast %37 : vector<4x1xi32> to vector<4x320xi32>
    %39 = arith.cmpi eq, %1, %38 : vector<4x320xi32>
    %40 = arith.ori %36, %39 : vector<4x320xi1>
    %41 = vector.extract_strided_slice %0 {offsets = [0, 10], sizes = [4, 1], strides = [1, 1]} : vector<4x12xi32> to vector<4x1xi32>
    %42 = vector.broadcast %41 : vector<4x1xi32> to vector<4x320xi32>
    %43 = arith.cmpi eq, %1, %42 : vector<4x320xi32>
    %44 = arith.ori %40, %43 : vector<4x320xi1>
    %45 = vector.extract_strided_slice %0 {offsets = [0, 11], sizes = [4, 1], strides = [1, 1]} : vector<4x12xi32> to vector<4x1xi32>
    %46 = vector.broadcast %45 : vector<4x1xi32> to vector<4x320xi32>
    %47 = arith.cmpi eq, %1, %46 : vector<4x320xi32>
    %48 = arith.ori %44, %47 : vector<4x320xi1>
    %49 = arith.extui %48 : vector<4x320xi1> to vector<4x320xi32>
    %50 = arith.sitofp %49 : vector<4x320xi32> to vector<4x320xf32>
    %c0_1 = arith.constant 0 : index
    %c0_2 = arith.constant 0 : index
    %51 = vector.load %arg2[%c0_1, %c0_2] : memref<320x128xf32, #tpu.memory_space<vmem>>, vector<320x128xf32>
    %cst = arith.constant dense<0.000000e+00> : vector<4x128xf32>
    %52 = tpu.matmul %50, %51, %cst {dimension_numbers = #tpu.dot_dimension_numbers<[1], [0], [0], [1], [0, 0, 1, 1], [], []>} : vector<4x320xf32>, vector<320x128xf32>, vector<4x128xf32> -> vector<4x128xf32>
    %c0_3 = arith.constant 0 : index
    %c0_4 = arith.constant 0 : index
    %53 = vector.load %arg3[%c0_3, %c0_4] : memref<4x128xf32, #tpu.memory_space<vmem>>, vector<4x128xf32>
    tpu.vector_store %arg3[%c0_3, %c0_4], %52 {strides = array<i32>} : memref<4x128xf32, #tpu.memory_space<vmem>>, vector<4x128xf32>,
    return
  }
  func.func @transform_0(%arg0: i32) -> (i32, i32) {
    %c0_i32 = arith.constant 0 : i32
    %c0_i32_0 = arith.constant 0 : i32
    return %arg0, %c0_i32 : i32, i32
  }
  func.func @transform_1(%arg0: i32) -> (i32, i32) {
    %c0_i32 = arith.constant 0 : i32
    %c0_i32_0 = arith.constant 0 : i32
    %c0_i32_1 = arith.constant 0 : i32
    return %c0_i32, %c0_i32_0 : i32, i32
  }
  func.func @transform_2(%arg0: i32) -> (i32, i32) {
    %c0_i32 = arith.constant 0 : i32
    %c0_i32_0 = arith.constant 0 : i32
    return %arg0, %c0_i32 : i32, i32
  }
}

</mosaic_0001>

<llo_original>
// kernel: tpu_custom_call.1
$region0: #{tpu_custom_call.1}
  #allocation0 [shape = 'u32[]', space=smem, size = 0x4, offset = 0x4, fixed_abs, tag = 'smem constant byte address 0x4 - core index']
  #allocation1 [shape = 'u32[144,128]{1,0:T(1,128)}', space=vmem, size = 0x12000, scoped, tag = 'internal scratch']
  %s0 = inlined_call_operand.hbm [shape: s32[4,12], index: 0, kind: input, shape index: {}]
  %s1 = inlined_call_operand.hbm [shape: f32[320,128], index: 1, kind: input, shape index: {}]
  %s2 = inlined_call_operand.hbm [shape: f32[4,128], index: 2, kind: output, shape index: {}]
  %s3 = sld [smem:[#allocation0]]
  $region26: #{tpu_custom_call.1} parent=0
    _
  %s5 = ssub.s32 1, %s3
  %s6 = scalar_select 0, %s5, %s3
  $region1: #{tpu_custom_call.1} parent=0
    #allocation2 [shape = 'u8[2048]{0}', space=vmem, size = 0x800, scoped, tag = 'input window, operand 0, single buffered']
    #allocation3 [shape = 's32[1]{0}', space=sflag, size = 0x4, scoped, tag = 'scoped memory for tpu_custom_call.1']
    #allocation4 [shape = 's32[1]{0}', space=sflag, size = 0x4, scoped, tag = 'scoped memory for tpu_custom_call.1']
    #allocation5 [shape = 'u8[163840]{0}', space=vmem, size = 0x28000, scoped, tag = 'input window, operand 1, single buffered']
    #allocation6 [shape = 's32[1]{0}', space=sflag, size = 0x4, scoped, tag = 'scoped memory for tpu_custom_call.1']
    #allocation7 [shape = 'u8[2048]{0}', space=vmem, size = 0x800, scoped, tag = 'output window, operand 0, single buffered']
    %7 = vsyncpa [#allocation3], 0
    %8 = vsyncpa [#allocation6], 0
    %9 = vsyncpa [#allocation4], 0
    // Predicated region
    $region2: #{tpu_custom_call.1} parent=1 // pred_check
      _
    $region3: #{tpu_custom_call.1} parent=1 // pred_check_branch
      %11 = sbr.rel (0) target = $region5
    $region4: #{tpu_custom_call.1} parent=1 // pred_region
      %s13 = ssub.s32 64, 64
      %14 = vsyncadd [#allocation3], %s13
      %s16 = sshll.u32 [#allocation2], 4
      %s17 = int_to_ptr.vmem [resolvable:$true] %s16
      %19 = dma.hbm_to_vmem [thread:$0]  %s0, 64, %s17, [#allocation3]
    $region5: #{tpu_custom_call.1} parent=1 // pred_fallthru
      _
    // Predicated region
    $region6: #{tpu_custom_call.1} parent=1 // pred_check
      _
    $region7: #{tpu_custom_call.1} parent=1 // pred_check_branch
      %21 = sbr.rel (0) target = $region9
    $region8: #{tpu_custom_call.1} parent=1 // pred_region
      %s23 = ssub.s32 5120, 5120
      %24 = vsyncadd [#allocation6], %s23
      %s25 = sshll.u32 [#allocation5], 4
      %s26 = int_to_ptr.vmem [resolvable:$true] %s25
      %31 = dma.hbm_to_vmem [thread:$0]  %s1, 5120, %s26, [#allocation6], 128, 128, 8
    $region9: #{tpu_custom_call.1} parent=1 // pred_fallthru
      _
    // Predicated region
    $region10: #{tpu_custom_call.1} parent=1 // pred_check
      _
    $region11: #{tpu_custom_call.1} parent=1 // pred_check_branch
      %33 = sbr.rel (0) target = $region13
    $region12: #{tpu_custom_call.1} parent=1 // pred_region
      %34 = dma.done [#allocation3], 64
    $region13: #{tpu_custom_call.1} parent=1 // pred_fallthru
      _
    // Predicated region
    $region14: #{tpu_custom_call.1} parent=1 // pred_check
      _
    $region15: #{tpu_custom_call.1} parent=1 // pred_check_branch
      %36 = sbr.rel (0) target = $region17
    $region16: #{tpu_custom_call.1} parent=1 // pred_region
      %37 = dma.done [#allocation6], 5120
    $region17: #{tpu_custom_call.1} parent=1 // pred_fallthru
      _
    %v38 = vld [vmem:[#allocation2] sm:$0xf]
    %v39 = vlaneseq
    %v40 = vand.u32 %v39, 127
    %v41 = vadd.s32 %v40, 128
    %v42 = vadd.s32 %v40, 256
    %43 = vset.pattern.permute.xlu0 0
    %44 = vperm.xlu0 %43, %v38
    %v45 = vpop.permute.xlu0 %44
    %vm46 = vcmp.eq.s32.totalorder %v40, %v45
    %vm47 = vcmp.eq.s32.totalorder %v41, %v45
    %vm48 = vcmp.eq.s32.totalorder %v42, %v45
    %49 = vset.pattern.permute.xlu0 1
    %50 = vperm.xlu0 %49, %v38
    %v51 = vpop.permute.xlu0 %50
    %vm52 = vcmp.eq.s32.totalorder %v40, %v51
    %vm53 = vcmp.eq.s32.totalorder %v41, %v51
    %vm54 = vcmp.eq.s32.totalorder %v42, %v51
    %vm55 = vmor %vm46, %vm52
    %vm56 = vmor %vm47, %vm53
    %vm57 = vmor %vm48, %vm54
    %58 = vset.pattern.permute.xlu0 2
    %59 = vperm.xlu0 %58, %v38
    %v60 = vpop.permute.xlu0 %59
    %vm61 = vcmp.eq.s32.totalorder %v40, %v60
    %vm62 = vcmp.eq.s32.totalorder %v41, %v60
    %vm63 = vcmp.eq.s32.totalorder %v42, %v60
    %vm64 = vmor %vm55, %vm61
    %vm65 = vmor %vm56, %vm62
    %vm66 = vmor %vm57, %vm63
    %67 = vset.pattern.permute.xlu0 3
    %68 = vperm.xlu0 %67, %v38
    %v69 = vpop.permute.xlu0 %68
    %vm70 = vcmp.eq.s32.totalorder %v40, %v69
    %vm71 = vcmp.eq.s32.totalorder %v41, %v69
    %vm72 = vcmp.eq.s32.totalorder %v42, %v69
    %vm73 = vmor %vm64, %vm70
    %vm74 = vmor %vm65, %vm71
    %vm75 = vmor %vm66, %vm72
    %76 = vset.pattern.permute.xlu0 4
    %77 = vperm.xlu0 %76, %v38
    %v78 = vpop.permute.xlu0 %77
    %vm79 = vcmp.eq.s32.totalorder %v40, %v78
    %vm80 = vcmp.eq.s32.totalorder %v41, %v78
    %vm81 = vcmp.eq.s32.totalorder %v42, %v78
    %vm82 = vmor %vm73, %vm79
    %vm83 = vmor %vm74, %vm80
    %vm84 = vmor %vm75, %vm81
    %85 = vset.pattern.permute.xlu0 5
    %86 = vperm.xlu0 %85, %v38
    %v87 = vpop.permute.xlu0 %86
    %vm88 = vcmp.eq.s32.totalorder %v40, %v87
    %vm89 = vcmp.eq.s32.totalorder %v41, %v87
    %vm90 = vcmp.eq.s32.totalorder %v42, %v87
    %vm91 = vmor %vm82, %vm88
    %vm92 = vmor %vm83, %vm89
    %vm93 = vmor %vm84, %vm90
    %94 = vset.pattern.permute.xlu0 6
    %95 = vperm.xlu0 %94, %v38
    %v96 = vpop.permute.xlu0 %95
    %vm97 = vcmp.eq.s32.totalorder %v40, %v96
    %vm98 = vcmp.eq.s32.totalorder %v41, %v96
    %vm99 = vcmp.eq.s32.totalorder %v42, %v96
    %vm100 = vmor %vm91, %vm97
    %vm101 = vmor %vm92, %vm98
    %vm102 = vmor %vm93, %vm99
    %103 = vset.pattern.permute.xlu0 7
    %104 = vperm.xlu0 %103, %v38
    %v105 = vpop.permute.xlu0 %104
    %vm106 = vcmp.eq.s32.totalorder %v40, %v105
    %vm107 = vcmp.eq.s32.totalorder %v41, %v105
    %vm108 = vcmp.eq.s32.totalorder %v42, %v105
    %vm109 = vmor %vm100, %vm106
    %vm110 = vmor %vm101, %vm107
    %vm111 = vmor %vm102, %vm108
    %112 = vset.pattern.permute.xlu0 8
    %113 = vperm.xlu0 %112, %v38
    %v114 = vpop.permute.xlu0 %113
    %vm115 = vcmp.eq.s32.totalorder %v40, %v114
    %vm116 = vcmp.eq.s32.totalorder %v41, %v114
    %vm117 = vcmp.eq.s32.totalorder %v42, %v114
    %vm118 = vmor %vm109, %vm115
    %vm119 = vmor %vm110, %vm116
    %vm120 = vmor %vm111, %vm117
    %121 = vset.pattern.permute.xlu0 9
    %122 = vperm.xlu0 %121, %v38
    %v123 = vpop.permute.xlu0 %122
    %vm124 = vcmp.eq.s32.totalorder %v40, %v123
    %vm125 = vcmp.eq.s32.totalorder %v41, %v123
    %vm126 = vcmp.eq.s32.totalorder %v42, %v123
    %vm127 = vmor %vm118, %vm124
    %vm128 = vmor %vm119, %vm125
    %vm129 = vmor %vm120, %vm126
    %130 = vset.pattern.permute.xlu0 10
    %131 = vperm.xlu0 %130, %v38
    %v132 = vpop.permute.xlu0 %131
    %vm133 = vcmp.eq.s32.totalorder %v40, %v132
    %vm134 = vcmp.eq.s32.totalorder %v41, %v132
    %vm135 = vcmp.eq.s32.totalorder %v42, %v132
    %vm136 = vmor %vm127, %vm133
    %vm137 = vmor %vm128, %vm134
    %vm138 = vmor %vm129, %vm135
    %139 = vset.pattern.permute.xlu0 11
    %140 = vperm.xlu0 %139, %v38
    %v141 = vpop.permute.xlu0 %140
    %vm142 = vcmp.eq.s32.totalorder %v40, %v141
    %vm143 = vcmp.eq.s32.totalorder %v41, %v141
    %vm144 = vcmp.eq.s32.totalorder %v42, %v141
    %vm145 = vmor %vm136, %vm142
    %vm146 = vmor %vm137, %vm143
    %vm147 = vmor %vm138, %vm144
    %v148 = vsel %vm145, 1, 0
    %v149 = vsel %vm146, 1, 0
    %v150 = vsel %vm147, 1, 0
    %v151 = vcvt.s32.f32 %v148
    %v152 = vcvt.s32.f32 %v149
    %v153 = vcvt.s32.f32 %v150
    %v154 = vld [vmem:[#allocation5] sm:$0xff]
    %v155 = vld [vmem:[#allocation5 + $0x8] sm:$0xff]
    %v156 = vld [vmem:[#allocation5 + $0x10] sm:$0xff]
    %v157 = vld [vmem:[#allocation5 + $0x18] sm:$0xff]
    %v158 = vld [vmem:[#allocation5 + $0x20] sm:$0xff]
    %v159 = vld [vmem:[#allocation5 + $0x28] sm:$0xff]
    %v160 = vld [vmem:[#allocation5 + $0x30] sm:$0xff]
    %v161 = vld [vmem:[#allocation5 + $0x38] sm:$0xff]
    %v162 = vld [vmem:[#allocation5 + $0x40] sm:$0xff]
    %v163 = vld [vmem:[#allocation5 + $0x48] sm:$0xff]
    %v164 = vld [vmem:[#allocation5 + $0x50] sm:$0xff]
    %v165 = vld [vmem:[#allocation5 + $0x58] sm:$0xff]
    %v166 = vld [vmem:[#allocation5 + $0x60] sm:$0xff]
    %v167 = vld [vmem:[#allocation5 + $0x68] sm:$0xff]
    %v168 = vld [vmem:[#allocation5 + $0x70] sm:$0xff]
    %v169 = vld [vmem:[#allocation5 + $0x78] sm:$0xff]
    %v170 = vld [vmem:[#allocation5 + $0x80] sm:$0xff]
    %v171 = vld [vmem:[#allocation5 + $0x88] sm:$0xff]
    %v172 = vld [vmem:[#allocation5 + $0x90] sm:$0xff]
    %v173 = vld [vmem:[#allocation5 + $0x98] sm:$0xff]
    %v174 = vld [vmem:[#allocation5 + $0xa0] sm:$0xff]
    %v175 = vld [vmem:[#allocation5 + $0xa8] sm:$0xff]
    %v176 = vld [vmem:[#allocation5 + $0xb0] sm:$0xff]
    %v177 = vld [vmem:[#allocation5 + $0xb8] sm:$0xff]
    %v178 = vld [vmem:[#allocation5 + $0xc0] sm:$0xff]
    %v179 = vld [vmem:[#allocation5 + $0xc8] sm:$0xff]
    %v180 = vld [vmem:[#allocation5 + $0xd0] sm:$0xff]
    %v181 = vld [vmem:[#allocation5 + $0xd8] sm:$0xff]
    %v182 = vld [vmem:[#allocation5 + $0xe0] sm:$0xff]
    %v183 = vld [vmem:[#allocation5 + $0xe8] sm:$0xff]
    %v184 = vld [vmem:[#allocation5 + $0xf0] sm:$0xff]
    %v185 = vld [vmem:[#allocation5 + $0xf8] sm:$0xff]
    %v186 = vld [vmem:[#allocation5 + $0x100] sm:$0xff]
    %v187 = vld [vmem:[#allocation5 + $0x108] sm:$0xff]
    %v188 = vld [vmem:[#allocation5 + $0x110] sm:$0xff]
    %v189 = vld [vmem:[#allocation5 + $0x118] sm:$0xff]
    %v190 = vld [vmem:[#allocation5 + $0x120] sm:$0xff]
    %v191 = vld [vmem:[#allocation5 + $0x128] sm:$0xff]
    %v192 = vld [vmem:[#allocation5 + $0x130] sm:$0xff]
    %v193 = vld [vmem:[#allocation5 + $0x138] sm:$0xff]
    %vm194 = vcmask 523264
    %v196 = vsel %vm194, %v153, 0
    %198 = vmatprep.subr.mxu0 0.0
    %199 = vmatpush1.msra.mxu0 %v154
    %200 = vmatprep.subr.mxu0 0.0
    %201 = vmatpush1.msra.mxu0 %v155
    %202 = vmatprep.subr.mxu0 0.0
    %203 = vmatpush1.msra.mxu0 %v156
    %204 = vmatprep.subr.mxu0 0.0
    %205 = vmatpush1.msra.mxu0 %v157
    %206 = vmatprep.subr.mxu0 0.0
    %207 = vmatpush1.msra.mxu0 %v158
    %208 = vmatprep.subr.mxu0 0.0
    %209 = vmatpush1.msra.mxu0 %v159
    %210 = vmatprep.subr.mxu0 0.0
    %211 = vmatpush1.msra.mxu0 %v160
    %212 = vmatprep.subr.mxu0 0.0
    %213 = vmatpush1.msra.mxu0 %v161
    %214 = vmatprep.subr.mxu0 0.0
    %215 = vmatpush1.msra.mxu0 %v162
    %216 = vmatprep.subr.mxu0 0.0
    %217 = vmatpush1.msra.mxu0 %v163
    %218 = vmatprep.subr.mxu0 0.0
    %219 = vmatpush1.msra.mxu0 %v164
    %220 = vmatprep.subr.mxu0 0.0
    %221 = vmatpush1.msra.mxu0 %v165
    %222 = vmatprep.subr.mxu0 0.0
    %223 = vmatpush1.msra.mxu0 %v166
    %224 = vmatprep.subr.mxu0 0.0
    %225 = vmatpush1.msra.mxu0 %v167
    %226 = vmatprep.subr.mxu0 0.0
    %227 = vmatpush1.msra.mxu0 %v168
    %228 = vmatprep.subr.mxu0 0.0
    %229 = vmatpush1.msra.mxu0 %v169
    %230 = vmatprep.subr.mxu0 0.0
    %231 = vmatpush1.msra.mxu0 %v170
    %232 = vmatprep.subr.mxu0 0.0
    %233 = vmatpush1.msra.mxu0 %v171
    %234 = vmatprep.subr.mxu0 0.0
    %235 = vmatpush1.msra.mxu0 %v172
    %236 = vmatprep.subr.mxu0 0.0
    %237 = vmatpush1.msra.mxu0 %v173
    %238 = vmatprep.subr.mxu0 0.0
    %239 = vmatpush1.msra.mxu0 %v174
    %240 = vmatprep.subr.mxu0 0.0
    %241 = vmatpush1.msra.mxu0 %v175
    %242 = vmatprep.subr.mxu0 0.0
    %243 = vmatpush1.msra.mxu0 %v176
    %244 = vmatprep.subr.mxu0 0.0
    %245 = vmatpush1.msra.mxu0 %v177
    %246 = vmatprep.subr.mxu0 0.0
    %247 = vmatpush1.msra.mxu0 %v178
    %248 = vmatprep.subr.mxu0 0.0
    %249 = vmatpush1.msra.mxu0 %v179
    %250 = vmatprep.subr.mxu0 0.0
    %251 = vmatpush1.msra.mxu0 %v180
    %252 = vmatprep.subr.mxu0 0.0
    %253 = vmatpush1.msra.mxu0 %v181
    %254 = vmatprep.subr.mxu0 0.0
    %255 = vmatpush1.msra.mxu0 %v182
    %256 = vmatprep.subr.mxu0 0.0
    %257 = vmatpush1.msra.mxu0 %v183
    %258 = vmatprep.subr.mxu0 0.0
    %259 = vmatpush1.msra.mxu0 %v184
    %260 = vmatprep.subr.mxu0 0.0
    %261 = vmatpush1.msra.mxu0 %v185
    %262 = vmatprep.mubr.f32.mxu0 %v152
    %263 = vmatmul.mubr.f32.gmra.mrb[0].mxu0 %v151
    %v264 = vpop.f32.mrb[0].mxu0
    %v265 = vadd.f32 0.0, %v264
    %v266 = vpop.f32.mrb[0].mxu0
    %267 = vdwg.mxu0
    %268 = vmatprep.subr.mxu0 0.0
    %269 = vmatpush1.msra.mxu0 %v186
    %270 = vmatprep.subr.mxu0 0.0
    %271 = vmatpush1.msra.mxu0 %v187
    %272 = vmatprep.subr.mxu0 0.0
    %273 = vmatpush1.msra.mxu0 %v188
    %274 = vmatprep.subr.mxu0 0.0
    %275 = vmatpush1.msra.mxu0 %v189
    %276 = vmatprep.subr.mxu0 0.0
    %277 = vmatpush1.msra.mxu0 %v190
    %278 = vmatprep.subr.mxu0 0.0
    %279 = vmatpush1.msra.mxu0 %v191
    %280 = vmatprep.subr.mxu0 0.0
    %281 = vmatpush1.msra.mxu0 %v192
    %282 = vmatprep.subr.mxu0 0.0
    %283 = vmatpush1.msra.mxu0 %v193
    %284 = vmatprep.subr.mxu0 0.0
    %285 = vmatpush1.msra.mxu0 0.0
    %286 = vmatprep.subr.mxu0 0.0
    %287 = vmatpush1.msra.mxu0 0.0
    %288 = vmatprep.subr.mxu0 0.0
    %289 = vmatpush1.msra.mxu0 0.0
    %290 = vmatprep.subr.mxu0 0.0
    %291 = vmatpush1.msra.mxu0 0.0
    %292 = vmatprep.subr.mxu0 0.0
    %293 = vmatpush1.msra.mxu0 0.0
    %294 = vmatprep.subr.mxu0 0.0
    %295 = vmatpush1.msra.mxu0 0.0
    %296 = vmatprep.subr.mxu0 0.0
    %297 = vmatpush1.msra.mxu0 0.0
    %298 = vmatprep.subr.mxu0 0.0
    %299 = vmatpush1.msra.mxu0 0.0
    %300 = vmatprep.subr.mxu0 0.0
    %301 = vmatpush1.msra.mxu0 0.0
    %302 = vmatprep.subr.mxu0 0.0
    %303 = vmatpush1.msra.mxu0 0.0
    %304 = vmatprep.subr.mxu0 0.0
    %305 = vmatpush1.msra.mxu0 0.0
    %306 = vmatprep.subr.mxu0 0.0
    %307 = vmatpush1.msra.mxu0 0.0
    %308 = vmatprep.subr.mxu0 0.0
    %309 = vmatpush1.msra.mxu0 0.0
    %310 = vmatprep.subr.mxu0 0.0
    %311 = vmatpush1.msra.mxu0 0.0
    %312 = vmatprep.subr.mxu0 0.0
    %313 = vmatpush1.msra.mxu0 0.0
    %314 = vmatprep.subr.mxu0 0.0
    %315 = vmatpush1.msra.mxu0 0.0
    %316 = vmatprep.subr.mxu0 0.0
    %317 = vmatpush1.msra.mxu0 0.0
    %318 = vmatprep.subr.mxu0 0.0
    %319 = vmatpush1.msra.mxu0 0.0
    %320 = vmatprep.subr.mxu0 0.0
    %321 = vmatpush1.msra.mxu0 0.0
    %322 = vmatprep.subr.mxu0 0.0
    %323 = vmatpush1.msra.mxu0 0.0
    %324 = vmatprep.subr.mxu0 0.0
    %325 = vmatpush1.msra.mxu0 0.0
    %326 = vmatprep.subr.mxu0 0.0
    %327 = vmatpush1.msra.mxu0 0.0
    %328 = vmatprep.subr.mxu0 0.0
    %329 = vmatpush1.msra.mxu0 0.0
    %330 = vmatprep.subr.mxu0 0.0
    %331 = vmatpush1.msra.mxu0 0.0
    %332 = vmatprep.mubr.f32.mxu0 0.0
    %333 = vmatmul.mubr.f32.gmra.mrb[0].mxu0 %v196
    %v334 = vpop.f32.mrb[0].mxu0
    %v335 = vadd.f32 %v265, %v334
    %v336 = vpop.f32.mrb[0].mxu0
    %337 = vdwg.mxu0
    %338 = vst [vmem:[#allocation7] sm:$0xf] %v335
    // Predicated region
    $region18: #{tpu_custom_call.1} parent=1 // pred_check
      _
    $region19: #{tpu_custom_call.1} parent=1 // pred_check_branch
      %340 = sbr.rel (0) target = $region21
    $region20: #{tpu_custom_call.1} parent=1 // pred_region
      %s342 = ssub.s32 64, 64
      %343 = vsyncadd [#allocation4], %s342
      %s345 = sshll.u32 [#allocation7], 4
      %s346 = int_to_ptr.vmem [resolvable:$true] %s345
      %348 = dma.vmem_to_hbm [thread:$0]  %s346, 64, %s2, [#allocation4]
    $region21: #{tpu_custom_call.1} parent=1 // pred_fallthru
      _
    // Predicated region
    $region22: #{tpu_custom_call.1} parent=1 // pred_check
      _
    $region23: #{tpu_custom_call.1} parent=1 // pred_check_branch
      %350 = sbr.rel (0) target = $region25
    $region24: #{tpu_custom_call.1} parent=1 // pred_region
      %351 = dma.done [#allocation4], 64
    $region25: #{tpu_custom_call.1} parent=1 // pred_fallthru
      _
    %352 = vsyncpa [#allocation3], 1
    %353 = vsyncpa [#allocation6], 1
    %354 = vsyncpa [#allocation4], 1

</llo_original>
